<compile_context>
chip_gen: v5e
topology: v5e:2x2
jax: 0.10.0
libtpu: 0.0.40
codegen_flags: <defaults>
</compile_context>

<pallas_src>
import functools

import jax
import jax.numpy as jnp
import numpy as np
from jax.experimental import pallas as pl
from jax.experimental.pallas import tpu as pltpu


def _round_up(x, m):
    return -(-x // m) * m


# ---------------------------------------------------------------------------
# Pallas kernel: `bt` graphs per grid step.
# ---------------------------------------------------------------------------
def _cross_atten_kernel(
    lang_ref,   # [bt*Lp, Din_p] bf16
    gn_ref,     # [bt*Np, Dn_p]  bf16
    ge_ref,     # [bt*Ep, De_p]  bf16
    p_ref,      # [Rtot, W]      f32   packed parameter slab
    out_ref,    # [bt, Wout]     f32   [node_att | edge_att | zero pad]
    *, L, Lp, N, Np, E, Ep, off_sa, off_gn, off_ge, off_ln, off_le,
):
    f32, bf16 = jnp.float32, jnp.bfloat16
    BLp, Din_p = lang_ref.shape
    bt = BLp // Lp
    Dn_p = gn_ref.shape[1]
    De_p = ge_ref.shape[1]
    W = p_ref.shape[1]
    Wout = out_ref.shape[1]

    # ---- packed parameters (static, 8-row-aligned segments) ----------------
    b_sa, w_av = p_ref[0], p_ref[1]            # [W] each
    b_gn, b_ge = p_ref[2], p_ref[3]
    w_nv, w_ev = p_ref[4], p_ref[5]
    b_ln, b_le = p_ref[6], p_ref[7]
    w_sa = p_ref[off_sa:off_sa + Din_p, :].astype(bf16)   # self_att_prj
    w_gn = p_ref[off_gn:off_gn + Dn_p, :].astype(bf16)    # graph_node_proj
    w_ge = p_ref[off_ge:off_ge + De_p, :].astype(bf16)    # graph_edge_proj
    w_ln = p_ref[off_ln:off_ln + Din_p, :]                # lang_node_proj (f32)
    w_le = p_ref[off_le:off_le + Din_p, :]                # lang_edge_proj (f32)

    # ---- language self-attention pooling (per graph) ------------------------
    lang_bf = lang_ref[...]                                            # bf16
    att_lang = jnp.tanh(
        jnp.dot(lang_bf, w_sa, preferred_element_type=f32) + b_sa)     # [bt*Lp, W]
    lang_logit = jnp.sum(att_lang * w_av, axis=-1, keepdims=True)      # [bt*Lp, 1]
    logit3 = lang_logit.reshape(bt, Lp, 1)           # free: Lp % 8 == 0 (f32 rows)
    if Lp != L:                                      # mask padded language rows
        lrow = jax.lax.broadcasted_iota(jnp.int32, (bt, Lp, 1), 1)
        logit3 = jnp.where(lrow < L, logit3, -1e30)
    lmax = jnp.max(logit3, axis=1, keepdims=True)
    lexp = jnp.exp(logit3 - lmax)
    att = lexp * pl.reciprocal(jnp.sum(lexp, axis=1, keepdims=True), approx=True)
    lang_f = lang_bf.astype(f32).reshape(bt, Lp, Din_p)
    lang_pool = jnp.sum(att * lang_f, axis=1)                          # [bt, Din_p]

    # ---- language -> node / edge queries (tiny f32 dots) --------------------
    lang_q_n = jnp.dot(lang_pool, w_ln, preferred_element_type=f32) + b_ln  # [bt, W]
    lang_q_e = jnp.dot(lang_pool, w_le, preferred_element_type=f32) + b_le  # [bt, W]

    # ---- node branch: projection + logits + softmax -------------------------
    node_p = jnp.dot(gn_ref[...], w_gn, preferred_element_type=f32) + b_gn  # [bt*Np, W]
    node_prj = jnp.tanh(node_p.reshape(bt, Np, W) + lang_q_n[:, None, :])
    node_logit = jnp.sum(node_prj * w_nv, axis=-1)                     # [bt, Np]
    if Np != N:                                      # mask padded graph nodes
        ncol = jax.lax.broadcasted_iota(jnp.int32, (bt, Np), 1)
        node_logit = jnp.where(ncol < N, node_logit, -1e30)
    nmax = jnp.max(node_logit, axis=-1, keepdims=True)
    nexp = jnp.exp(node_logit - nmax)
    node_att = nexp * pl.reciprocal(jnp.sum(nexp, axis=-1, keepdims=True),
                                    approx=True)                       # [bt, Np]

    # ---- edge branch ---------------------------------------------------------
    edge_p = jnp.dot(ge_ref[...], w_ge, preferred_element_type=f32) + b_ge
    edge_prj = jnp.tanh(edge_p.reshape(bt, Ep, W) + lang_q_e[:, None, :])
    edge_logit = jnp.sum(edge_prj * w_ev, axis=-1)                     # [bt, Ep]
    if Ep != E:                                      # mask padded graph edges
        ecol = jax.lax.broadcasted_iota(jnp.int32, (bt, Ep), 1)
        edge_logit = jnp.where(ecol < E, edge_logit, -1e30)
    emax = jnp.max(edge_logit, axis=-1, keepdims=True)
    eexp = jnp.exp(edge_logit - emax)
    edge_att = eexp * pl.reciprocal(jnp.sum(eexp, axis=-1, keepdims=True),
                                    approx=True)                       # [bt, Ep]

    # ---- single lane-dense output slab (unmasked full-lane store) -----------
    pieces = [node_att, edge_att]
    pad = Wout - (Np + Ep)
    if pad:
        pieces.append(jnp.zeros((bt, pad), f32))
    out_ref[...] = jnp.concatenate(pieces, axis=-1)                    # [bt, Wout]


# ---------------------------------------------------------------------------
# Graphs-per-step from a VMEM byte budget.
# ---------------------------------------------------------------------------
def _choose_bt(B, per_graph_bytes, target_steps=8):
    """Pick graphs/step so blocks fit a conservative VMEM budget while giving
    the pipeline several (even) grid steps of DMA/compute overlap.

    Budget is capped at 8 MiB which comfortably fits every generation
    (v7x: 64 MiB physical / 32 MiB default-scoped VMEM; v5e/v6e: 128 MiB)."""
    try:
        vmem = pltpu.get_tpu_info().vmem_capacity_bytes
    except Exception:                       # interpret mode / API drift
        vmem = 64 * 1024 * 1024             # v7x-sized fallback
    budget = min(vmem // 8, 8 * 1024 * 1024)
    cap = max(1, budget // max(per_graph_bytes, 1))
    if B <= min(cap, 8):
        return B                            # single step; blocks span full arrays
    steps = max(target_steps, -(-B // cap))
    if steps % 2:
        steps += 1                          # even step count: dual-TC friendly
    bt = _round_up(max(1, -(-B // steps)), 8)   # 8-aligned [bt, Wout] out blocks
    if cap >= 8:
        bt = min(bt, (cap // 8) * 8)        # respect the VMEM budget
    return max(8, bt)


# ---------------------------------------------------------------------------
# Wrapper
# ---------------------------------------------------------------------------
def cross_atten(lang, graph_nodes, graph_edges, params):
    f32, bf16 = jnp.float32, jnp.bfloat16
    B, L, Din = lang.shape
    _, N, Dn = graph_nodes.shape
    _, E, De = graph_edges.shape
    H = params["w_sa"].shape[1]
    An = params["w_gn"].shape[1]
    Ae = params["w_ge"].shape[1]
    assert Din == H, "CrossAtten requires in_dim == hidden_size"

    Lp, Np, Ep = _round_up(L, 8), _round_up(N, 8), _round_up(E, 8)
    Din_p, Dn_p, De_p = _round_up(Din, 8), _round_up(Dn, 8), _round_up(De, 8)
    W = max(H, An, Ae)                       # common (zero-padded) lane width
    Wout = max(128, _round_up(Np + Ep, 128))  # lane-dense output width

    # ---- single packed f32 parameter slab (8-row-aligned segments) ----------
    def seg(a, rows):
        a = jnp.asarray(a, f32)
        return jnp.pad(a, ((0, rows - a.shape[0]), (0, W - a.shape[1])))

    off_sa = 8
    off_gn = off_sa + Din_p
    off_ge = off_gn + Dn_p
    off_ln = off_ge + De_p
    off_le = off_ln + Din_p
    pslab = jnp.concatenate([
        seg(params["b_sa"], 1), seg(params["w_av"].T, 1),     # rows 0, 1
        seg(params["b_gn"], 1), seg(params["b_ge"], 1),       # rows 2, 3
        seg(params["w_nv"].T, 1), seg(params["w_ev"].T, 1),   # rows 4, 5
        seg(params["b_ln"], 1), seg(params["b_le"], 1),       # rows 6, 7
        seg(params["w_sa"], Din_p),
        seg(params["w_gn"], Dn_p),
        seg(params["w_ge"], De_p),
        seg(params["w_ln"], Din_p),
        seg(params["w_le"], Din_p),
    ], axis=0)
    # NOTE: b_av / b_nv / b_ev intentionally dropped (softmax shift-invariance).

    # ---- graphs per step from a VMEM byte budget -----------------------------
    per_graph = (2 * 2 * (Lp * Din_p + Np * Dn_p + Ep * De_p)          # bf16 in x2 buf
                 + 4 * (Lp * Din_p + 2 * Lp * W + 3 * Np * W + 3 * Ep * W)  # f32 temps
                 + 2 * 4 * Wout)                                       # f32 out x2 buf
    bt = _choose_bt(B, per_graph)
    G = -(-B // bt)
    Bp = G * bt

    # ---- bf16 operands, flattened at BlockSpec level (no node/edge concat) ---
    def prep(x, rows, rows_p, feat, feat_p):
        x = x.astype(bf16)
        if Bp != B or rows_p != rows or feat_p != feat:
            x = jnp.pad(x, ((0, Bp - B), (0, rows_p - rows), (0, feat_p - feat)))
        return x.reshape(Bp * rows_p, feat_p)

    lang2 = prep(lang, L, Lp, Din, Din_p)
    gn2 = prep(graph_nodes, N, Np, Dn, Dn_p)
    ge2 = prep(graph_edges, E, Ep, De, De_p)

    kernel = functools.partial(
        _cross_atten_kernel, L=L, Lp=Lp, N=N, Np=Np, E=E, Ep=Ep,
        off_sa=off_sa, off_gn=off_gn, off_ge=off_ge, off_ln=off_ln, off_le=off_le)

    out = pl.pallas_call(
        kernel,
        grid=(G,),
        in_specs=[
            pl.BlockSpec((bt * Lp, Din_p), lambda i: (i, 0)),
            pl.BlockSpec((bt * Np, Dn_p), lambda i: (i, 0)),
            pl.BlockSpec((bt * Ep, De_p), lambda i: (i, 0)),
            pl.BlockSpec(pslab.shape, lambda i: (0, 0)),
        ],
        out_specs=pl.BlockSpec((bt, Wout), lambda i: (i, 0)),
        out_shape=jax.ShapeDtypeStruct((Bp, Wout), f32),
        compiler_params=pltpu.CompilerParams(
            dimension_semantics=("parallel",),
            vmem_limit_bytes=32 * 1024 * 1024),
    )(lang2, gn2, ge2, pslab)

    node_att = out[:B, :N]                                    # [B, N]
    edge_half = out[:B, Np:Np + E]                            # [B, E]
    edge_att = jnp.concatenate([edge_half, edge_half], axis=-1)   # torch .repeat(2)
    return node_att, edge_att


# ---------------------------------------------------------------------------
# Pure-JAX reference (mirrors the PyTorch forward per batch element)
# ---------------------------------------------------------------------------
def cross_atten_ref(lang, graph_nodes, graph_edges, P):
    def lin(x, w, b):
        return x @ w + b

    node_outs, edge_outs = [], []
    for b in range(lang.shape[0]):
        l = lang[b]
        att_lang = jnp.tanh(lin(l, P["w_sa"], P["b_sa"]))
        att_value = jax.nn.softmax(lin(att_lang, P["w_av"], P["b_av"])[:, 0], axis=0)
        pooled = att_value[None, :] @ l
        lang_node_att = lin(pooled, P["w_ln"], P["b_ln"])
        lang_edge_att = lin(pooled, P["w_le"], P["b_le"])
        graph_node_att = lin(graph_nodes[b], P["w_gn"], P["b_gn"])
        graph_edge_att = lin(graph_edges[b], P["w_ge"], P["b_ge"])
        node_prj = jnp.tanh(lang_node_att + graph_node_att)
        edge_prj = jnp.tanh(lang_edge_att + graph_edge_att)
        node_att = jax.nn.softmax(lin(node_prj, P["w_nv"], P["b_nv"])[:, 0], axis=0)
        edge_att = jax.nn.softmax(lin(edge_prj, P["w_ev"], P["b_ev"])[:, 0], axis=0)
        node_outs.append(node_att)
        edge_outs.append(jnp.concatenate([edge_att, edge_att], axis=0))
    return jnp.stack(node_outs), jnp.stack(edge_outs)


# ---------------------------------------------------------------------------
# Main
# ---------------------------------------------------------------------------
if __name__ == "__main__":
    def run_case(key, B, L, N, E, in_dim, node_size, edge_size,
                 att_node_size, att_edge_size):
        hidden_size = in_dim          # required by the original module
        keys = iter(jax.random.split(key, 32))

        def w(shape):                 # weights stored already transposed [in, out]
            return (0.1 * jax.random.normal(next(keys), shape)).astype(jnp.float32)

        def bvec(n):
            return (0.1 * jax.random.normal(next(keys), (1, n))).astype(jnp.float32)

        params = {
            "w_sa": w((in_dim, hidden_size)),        "b_sa": bvec(hidden_size),
            "w_av": w((hidden_size, 1)),             "b_av": bvec(1),
            "w_ln": w((hidden_size, att_node_size)), "b_ln": bvec(att_node_size),
            "w_le": w((hidden_size, att_edge_size)), "b_le": bvec(att_edge_size),
            "w_gn": w((node_size, att_node_size)),   "b_gn": bvec(att_node_size),
            "w_ge": w((edge_size, att_edge_size)),   "b_ge": bvec(att_edge_size),
            "w_nv": w((att_node_size, 1)),           "b_nv": bvec(1),
            "w_ev": w((att_edge_size, 1)),           "b_ev": bvec(1),
        }
        lang = jax.random.normal(next(keys), (B, L, in_dim), dtype=jnp.float32)
        gn = jax.random.normal(next(keys), (B, N, node_size), dtype=jnp.float32)
        ge = jax.random.normal(next(keys), (B, E, edge_size), dtype=jnp.float32)

        node_att, edge_att = jax.jit(cross_atten)(lang, gn, ge, params)
        jax.block_until_ready((node_att, edge_att))

        node_ref, edge_ref = cross_atten_ref(lang, gn, ge, params)
        # bf16 MXU operands + approx reciprocal -> loosened tolerances.
        np.testing.assert_allclose(np.asarray(node_att), np.asarray(node_ref),
                                   rtol=3e-2, atol=5e-4)
        np.testing.assert_allclose(np.asarray(edge_att), np.asarray(edge_ref),
                                   rtol=3e-2, atol=5e-4)

    key = jax.random.PRNGKey(0)
    k1, k2 = jax.random.split(key)
    # canonical small config (single-step grid, blocks span full arrays)
    run_case(k1, B=2, L=8, N=16, E=16, in_dim=32, node_size=32, edge_size=32,
             att_node_size=32, att_edge_size=32)
    # ragged / multi-step config (exercises row padding + masks + pipelined grid)
    run_case(k2, B=12, L=6, N=20, E=12, in_dim=32, node_size=24, edge_size=40,
             att_node_size=32, att_edge_size=16)

    print("KERNEL_OK")
</pallas_src>

<mosaic_0001>
module attributes {stable_mosaic.version = 11 : i64} {
  func.func @_cross_atten_kernel(%arg0: i32, %arg1: memref<16x32xbf16, #tpu.memory_space<vmem>>, %arg2: memref<32x32xbf16, #tpu.memory_space<vmem>>, %arg3: memref<32x32xbf16, #tpu.memory_space<vmem>>, %arg4: memref<168x32xf32, #tpu.memory_space<vmem>>, %arg5: memref<2x128xf32, #tpu.memory_space<vmem>>) attributes {dimension_semantics = [#tpu.dimension_semantics<parallel>], iteration_bounds = array<i64: 1>, scalar_prefetch = 0 : i64, scratch_operands = 0 : i64, tpu.core_type = #tpu.core_type<tc>, window_params = [{transform_indices = @transform_0, window_bounds = array<i64: 16, 32>}, {transform_indices = @transform_1, window_bounds = array<i64: 32, 32>}, {transform_indices = @transform_2, window_bounds = array<i64: 32, 32>}, {pipeline_mode = #tpu.pipeline_mode<synchronous>, transform_indices = @transform_3, window_bounds = array<i64: 168, 32>}, {transform_indices = @transform_4, window_bounds = array<i64: 2, 128>}]} {
    %c0 = arith.constant 0 : index
    %c0_0 = arith.constant 0 : index
    %0 = vector.load %arg4[%c0, %c0_0] : memref<168x32xf32, #tpu.memory_space<vmem>>, vector<1x32xf32>
    %1 = vector.shape_cast %0 : vector<1x32xf32> to vector<32xf32>
    %c1 = arith.constant 1 : index
    %c0_1 = arith.constant 0 : index
    %2 = vector.load %arg4[%c1, %c0_1] : memref<168x32xf32, #tpu.memory_space<vmem>>, vector<1x32xf32>
    %3 = vector.shape_cast %2 : vector<1x32xf32> to vector<32xf32>
    %c2 = arith.constant 2 : index
    %c0_2 = arith.constant 0 : index
    %4 = vector.load %arg4[%c2, %c0_2] : memref<168x32xf32, #tpu.memory_space<vmem>>, vector<1x32xf32>
    %5 = vector.shape_cast %4 : vector<1x32xf32> to vector<32xf32>
    %c3 = arith.constant 3 : index
    %c0_3 = arith.constant 0 : index
    %6 = vector.load %arg4[%c3, %c0_3] : memref<168x32xf32, #tpu.memory_space<vmem>>, vector<1x32xf32>
    %7 = vector.shape_cast %6 : vector<1x32xf32> to vector<32xf32>
    %c4 = arith.constant 4 : index
    %c0_4 = arith.constant 0 : index
    %8 = vector.load %arg4[%c4, %c0_4] : memref<168x32xf32, #tpu.memory_space<vmem>>, vector<1x32xf32>
    %9 = vector.shape_cast %8 : vector<1x32xf32> to vector<32xf32>
    %c5 = arith.constant 5 : index
    %c0_5 = arith.constant 0 : index
    %10 = vector.load %arg4[%c5, %c0_5] : memref<168x32xf32, #tpu.memory_space<vmem>>, vector<1x32xf32>
    %11 = vector.shape_cast %10 : vector<1x32xf32> to vector<32xf32>
    %c6 = arith.constant 6 : index
    %c0_6 = arith.constant 0 : index
    %12 = vector.load %arg4[%c6, %c0_6] : memref<168x32xf32, #tpu.memory_space<vmem>>, vector<1x32xf32>
    %13 = vector.shape_cast %12 : vector<1x32xf32> to vector<32xf32>
    %c7 = arith.constant 7 : index
    %c0_7 = arith.constant 0 : index
    %14 = vector.load %arg4[%c7, %c0_7] : memref<168x32xf32, #tpu.memory_space<vmem>>, vector<1x32xf32>
    %15 = vector.shape_cast %14 : vector<1x32xf32> to vector<32xf32>
    %c8 = arith.constant 8 : index
    %c0_8 = arith.constant 0 : index
    %16 = vector.load %arg4[%c8, %c0_8] : memref<168x32xf32, #tpu.memory_space<vmem>>, vector<32x32xf32>
    %17 = arith.truncf %16 : vector<32x32xf32> to vector<32x32xbf16>
    %c40 = arith.constant 40 : index
    %c0_9 = arith.constant 0 : index
    %18 = vector.load %arg4[%c40, %c0_9] : memref<168x32xf32, #tpu.memory_space<vmem>>, vector<32x32xf32>
    %19 = arith.truncf %18 : vector<32x32xf32> to vector<32x32xbf16>
    %c72 = arith.constant 72 : index
    %c0_10 = arith.constant 0 : index
    %20 = vector.load %arg4[%c72, %c0_10] : memref<168x32xf32, #tpu.memory_space<vmem>>, vector<32x32xf32>
    %21 = arith.truncf %20 : vector<32x32xf32> to vector<32x32xbf16>
    %c104 = arith.constant 104 : index
    %c0_11 = arith.constant 0 : index
    %22 = vector.load %arg4[%c104, %c0_11] : memref<168x32xf32, #tpu.memory_space<vmem>>, vector<32x32xf32>
    %c136 = arith.constant 136 : index
    %c0_12 = arith.constant 0 : index
    %23 = vector.load %arg4[%c136, %c0_12] : memref<168x32xf32, #tpu.memory_space<vmem>>, vector<32x32xf32>
    %c0_13 = arith.constant 0 : index
    %c0_14 = arith.constant 0 : index
    %24 = vector.load %arg1[%c0_13, %c0_14] : memref<16x32xbf16, #tpu.memory_space<vmem>>, vector<16x32xbf16>
    %cst = arith.constant dense<0.000000e+00> : vector<16x32xf32>
    %25 = tpu.matmul %24, %17, %cst {dimension_numbers = #tpu.dot_dimension_numbers<[1], [0], [0], [1], [0, 0, 1, 1], [], []>} : vector<16x32xbf16>, vector<32x32xbf16>, vector<16x32xf32> -> vector<16x32xf32>
    %26 = vector.shape_cast %1 : vector<32xf32> to vector<1x32xf32>
    %27 = vector.broadcast %26 : vector<1x32xf32> to vector<16x32xf32>
    %28 = arith.addf %25, %27 : vector<16x32xf32>
    %29 = math.tanh %28 : vector<16x32xf32>
    %30 = vector.shape_cast %3 : vector<32xf32> to vector<1x32xf32>
    %31 = vector.broadcast %30 : vector<1x32xf32> to vector<16x32xf32>
    %32 = arith.mulf %29, %31 : vector<16x32xf32>
    %cst_15 = arith.constant dense<0.000000e+00> : vector<16xf32>
    %33 = vector.multi_reduction <add>, %32, %cst_15 [1] : vector<16x32xf32> to vector<16xf32>
    %34 = vector.shape_cast %33 : vector<16xf32> to vector<16x1xf32>
    %35 = vector.shape_cast %34 : vector<16x1xf32> to vector<2x8x1xf32>
    %cst_16 = arith.constant dense<0xFF800000> : vector<2x1xf32>
    %36 = vector.multi_reduction <maximumf>, %35, %cst_16 [1] : vector<2x8x1xf32> to vector<2x1xf32>
    %37 = vector.shape_cast %36 : vector<2x1xf32> to vector<2x1x1xf32>
    %38 = vector.broadcast %37 : vector<2x1x1xf32> to vector<2x8x1xf32>
    %39 = arith.subf %35, %38 : vector<2x8x1xf32>
    %40 = math.exp %39 : vector<2x8x1xf32>
    %cst_17 = arith.constant dense<0.000000e+00> : vector<2x1xf32>
    %41 = vector.multi_reduction <add>, %40, %cst_17 [1] : vector<2x8x1xf32> to vector<2x1xf32>
    %42 = vector.shape_cast %41 : vector<2x1xf32> to vector<2x1x1xf32>
    %43 = tpu.reciprocal %42 {approx = true} : vector<2x1x1xf32> -> vector<2x1x1xf32>
    %44 = vector.broadcast %43 : vector<2x1x1xf32> to vector<2x8x1xf32>
    %45 = arith.mulf %40, %44 : vector<2x8x1xf32>
    %46 = arith.extf %24 : vector<16x32xbf16> to vector<16x32xf32>
    %47 = vector.shape_cast %46 : vector<16x32xf32> to vector<2x8x32xf32>
    %48 = vector.broadcast %45 : vector<2x8x1xf32> to vector<2x8x32xf32>
    %49 = arith.mulf %48, %47 : vector<2x8x32xf32>
    %cst_18 = arith.constant dense<0.000000e+00> : vector<2x32xf32>
    %50 = vector.multi_reduction <add>, %49, %cst_18 [1] : vector<2x8x32xf32> to vector<2x32xf32>
    %cst_19 = arith.constant dense<0.000000e+00> : vector<2x32xf32>
    %51 = tpu.matmul %50, %22, %cst_19 {dimension_numbers = #tpu.dot_dimension_numbers<[1], [0], [0], [1], [0, 0, 1, 1], [], []>} : vector<2x32xf32>, vector<32x32xf32>, vector<2x32xf32> -> vector<2x32xf32>
    %52 = vector.shape_cast %13 : vector<32xf32> to vector<1x32xf32>
    %53 = vector.broadcast %52 : vector<1x32xf32> to vector<2x32xf32>
    %54 = arith.addf %51, %53 : vector<2x32xf32>
    %cst_20 = arith.constant dense<0.000000e+00> : vector<2x32xf32>
    %55 = tpu.matmul %50, %23, %cst_20 {dimension_numbers = #tpu.dot_dimension_numbers<[1], [0], [0], [1], [0, 0, 1, 1], [], []>} : vector<2x32xf32>, vector<32x32xf32>, vector<2x32xf32> -> vector<2x32xf32>
    %56 = vector.shape_cast %15 : vector<32xf32> to vector<1x32xf32>
    %57 = vector.broadcast %56 : vector<1x32xf32> to vector<2x32xf32>
    %58 = arith.addf %55, %57 : vector<2x32xf32>
    %c0_21 = arith.constant 0 : index
    %c0_22 = arith.constant 0 : index
    %59 = vector.load %arg2[%c0_21, %c0_22] : memref<32x32xbf16, #tpu.memory_space<vmem>>, vector<32x32xbf16>
    %cst_23 = arith.constant dense<0.000000e+00> : vector<32x32xf32>
    %60 = tpu.matmul %59, %19, %cst_23 {dimension_numbers = #tpu.dot_dimension_numbers<[1], [0], [0], [1], [0, 0, 1, 1], [], []>} : vector<32x32xbf16>, vector<32x32xbf16>, vector<32x32xf32> -> vector<32x32xf32>
    %61 = vector.shape_cast %5 : vector<32xf32> to vector<1x32xf32>
    %62 = vector.broadcast %61 : vector<1x32xf32> to vector<32x32xf32>
    %63 = arith.addf %60, %62 : vector<32x32xf32>
    %64 = vector.shape_cast %63 : vector<32x32xf32> to vector<2x16x32xf32>
    %65 = vector.shape_cast %54 : vector<2x32xf32> to vector<2x1x32xf32>
    %66 = vector.broadcast %65 : vector<2x1x32xf32> to vector<2x16x32xf32>
    %67 = arith.addf %64, %66 : vector<2x16x32xf32>
    %68 = math.tanh %67 : vector<2x16x32xf32>
    %69 = vector.shape_cast %9 : vector<32xf32> to vector<1x1x32xf32>
    %70 = vector.broadcast %69 : vector<1x1x32xf32> to vector<2x16x32xf32>
    %71 = arith.mulf %68, %70 : vector<2x16x32xf32>
    %cst_24 = arith.constant dense<0.000000e+00> : vector<2x16xf32>
    %72 = vector.multi_reduction <add>, %71, %cst_24 [2] : vector<2x16x32xf32> to vector<2x16xf32>
    %cst_25 = arith.constant dense<0xFF800000> : vector<2xf32>
    %73 = vector.multi_reduction <maximumf>, %72, %cst_25 [1] : vector<2x16xf32> to vector<2xf32>
    %74 = vector.shape_cast %73 : vector<2xf32> to vector<2x1xf32>
    %75 = vector.broadcast %74 : vector<2x1xf32> to vector<2x16xf32>
    %76 = arith.subf %72, %75 : vector<2x16xf32>
    %77 = math.exp %76 : vector<2x16xf32>
    %cst_26 = arith.constant dense<0.000000e+00> : vector<2xf32>
    %78 = vector.multi_reduction <add>, %77, %cst_26 [1] : vector<2x16xf32> to vector<2xf32>
    %79 = vector.shape_cast %78 : vector<2xf32> to vector<2x1xf32>
    %80 = tpu.reciprocal %79 {approx = true} : vector<2x1xf32> -> vector<2x1xf32>
    %81 = vector.broadcast %80 : vector<2x1xf32> to vector<2x16xf32>
    %82 = arith.mulf %77, %81 : vector<2x16xf32>
    %c0_27 = arith.constant 0 : index
    %c0_28 = arith.constant 0 : index
    %83 = vector.load %arg3[%c0_27, %c0_28] : memref<32x32xbf16, #tpu.memory_space<vmem>>, vector<32x32xbf16>
    %cst_29 = arith.constant dense<0.000000e+00> : vector<32x32xf32>
    %84 = tpu.matmul %83, %21, %cst_29 {dimension_numbers = #tpu.dot_dimension_numbers<[1], [0], [0], [1], [0, 0, 1, 1], [], []>} : vector<32x32xbf16>, vector<32x32xbf16>, vector<32x32xf32> -> vector<32x32xf32>
    %85 = vector.shape_cast %7 : vector<32xf32> to vector<1x32xf32>
    %86 = vector.broadcast %85 : vector<1x32xf32> to vector<32x32xf32>
    %87 = arith.addf %84, %86 : vector<32x32xf32>
    %88 = vector.shape_cast %87 : vector<32x32xf32> to vector<2x16x32xf32>
    %89 = vector.shape_cast %58 : vector<2x32xf32> to vector<2x1x32xf32>
    %90 = vector.broadcast %89 : vector<2x1x32xf32> to vector<2x16x32xf32>
    %91 = arith.addf %88, %90 : vector<2x16x32xf32>
    %92 = math.tanh %91 : vector<2x16x32xf32>
    %93 = vector.shape_cast %11 : vector<32xf32> to vector<1x1x32xf32>
    %94 = vector.broadcast %93 : vector<1x1x32xf32> to vector<2x16x32xf32>
    %95 = arith.mulf %92, %94 : vector<2x16x32xf32>
    %cst_30 = arith.constant dense<0.000000e+00> : vector<2x16xf32>
    %96 = vector.multi_reduction <add>, %95, %cst_30 [2] : vector<2x16x32xf32> to vector<2x16xf32>
    %cst_31 = arith.constant dense<0xFF800000> : vector<2xf32>
    %97 = vector.multi_reduction <maximumf>, %96, %cst_31 [1] : vector<2x16xf32> to vector<2xf32>
    %98 = vector.shape_cast %97 : vector<2xf32> to vector<2x1xf32>
    %99 = vector.broadcast %98 : vector<2x1xf32> to vector<2x16xf32>
    %100 = arith.subf %96, %99 : vector<2x16xf32>
    %101 = math.exp %100 : vector<2x16xf32>
    %cst_32 = arith.constant dense<0.000000e+00> : vector<2xf32>
    %102 = vector.multi_reduction <add>, %101, %cst_32 [1] : vector<2x16xf32> to vector<2xf32>
    %103 = vector.shape_cast %102 : vector<2xf32> to vector<2x1xf32>
    %104 = tpu.reciprocal %103 {approx = true} : vector<2x1xf32> -> vector<2x1xf32>
    %105 = vector.broadcast %104 : vector<2x1xf32> to vector<2x16xf32>
    %106 = arith.mulf %101, %105 : vector<2x16xf32>
    %cst_33 = arith.constant 0.000000e+00 : f32
    %107 = vector.broadcast %cst_33 : f32 to vector<2x96xf32>
    %108 = tpu.concatenate %82, %106, %107 in 1 : vector<2x16xf32>, vector<2x16xf32>, vector<2x96xf32> -> vector<2x128xf32>
    %c0_34 = arith.constant 0 : index
    %c0_35 = arith.constant 0 : index
    %109 = vector.load %arg5[%c0_34, %c0_35] : memref<2x128xf32, #tpu.memory_space<vmem>>, vector<2x128xf32>
    tpu.vector_store %arg5[%c0_34, %c0_35], %108 {strides = array<i32>} : memref<2x128xf32, #tpu.memory_space<vmem>>, vector<2x128xf32>,
    return
  }
  func.func @transform_0(%arg0: i32) -> (i32, i32) {
    %c0_i32 = arith.constant 0 : i32
    %c0_i32_0 = arith.constant 0 : i32
    return %arg0, %c0_i32 : i32, i32
  }
  func.func @transform_1(%arg0: i32) -> (i32, i32) {
    %c0_i32 = arith.constant 0 : i32
    %c0_i32_0 = arith.constant 0 : i32
    return %arg0, %c0_i32 : i32, i32
  }
  func.func @transform_2(%arg0: i32) -> (i32, i32) {
    %c0_i32 = arith.constant 0 : i32
    %c0_i32_0 = arith.constant 0 : i32
    return %arg0, %c0_i32 : i32, i32
  }
  func.func @transform_3(%arg0: i32) -> (i32, i32) {
    %c0_i32 = arith.constant 0 : i32
    %c0_i32_0 = arith.constant 0 : i32
    %c0_i32_1 = arith.constant 0 : i32
    return %c0_i32, %c0_i32_0 : i32, i32
  }
  func.func @transform_4(%arg0: i32) -> (i32, i32) {
    %c0_i32 = arith.constant 0 : i32
    %c0_i32_0 = arith.constant 0 : i32
    return %arg0, %c0_i32 : i32, i32
  }
}

</mosaic_0001>

<llo_original>
// kernel: cross_atten.1
$region0: #{cross_atten.1}
  #allocation0 [shape = 'u32[]', space=smem, size = 0x4, offset = 0x4, fixed_abs, tag = 'smem constant byte address 0x4 - core index']
  #allocation1 [shape = 'u32[72,128]{1,0:T(1,128)}', space=vmem, size = 0x9000, scoped, tag = 'internal scratch']
  %s0 = inlined_call_operand.vmem [shape: bf16[16,32], index: 0, kind: input, shape index: {}]
  %s1 = inlined_call_operand.vmem [shape: bf16[32,32], index: 1, kind: input, shape index: {}]
  %s2 = inlined_call_operand.vmem [shape: bf16[32,32], index: 2, kind: input, shape index: {}]
  %s3 = inlined_call_operand.vmem [shape: f32[168,32], index: 3, kind: input, shape index: {}]
  %s4 = inlined_call_operand.vmem [shape: f32[2,128], index: 4, kind: output, shape index: {}]
  %s5 = sld [smem:[#allocation0]]
  $region26: #{cross_atten.1} parent=0
    _
  %s7 = ssub.s32 1, %s5
  %s8 = scalar_select 0, %s7, %s5
  // Predicated region
  $region2: #{cross_atten.1} parent=0 // pred_check
    _
  $region3: #{cross_atten.1} parent=0 // pred_check_branch
    %10 = sbr.rel (0) target = $region5
  $region4: #{cross_atten.1} parent=0 // pred_region
    _
  $region5: #{cross_atten.1} parent=0 // pred_fallthru
    _
  // Predicated region
  $region6: #{cross_atten.1} parent=0 // pred_check
    _
  $region7: #{cross_atten.1} parent=0 // pred_check_branch
    %12 = sbr.rel (0) target = $region9
  $region8: #{cross_atten.1} parent=0 // pred_region
    _
  $region9: #{cross_atten.1} parent=0 // pred_fallthru
    _
  // Predicated region
  $region10: #{cross_atten.1} parent=0 // pred_check
    _
  $region11: #{cross_atten.1} parent=0 // pred_check_branch
    %14 = sbr.rel (0) target = $region13
  $region12: #{cross_atten.1} parent=0 // pred_region
    _
  $region13: #{cross_atten.1} parent=0 // pred_fallthru
    _
  // Predicated region
  $region14: #{cross_atten.1} parent=0 // pred_check
    _
  $region15: #{cross_atten.1} parent=0 // pred_check_branch
    %16 = sbr.rel (0) target = $region17
  $region16: #{cross_atten.1} parent=0 // pred_region
    _
  $region17: #{cross_atten.1} parent=0 // pred_fallthru
    _
  %v18 = vld [vmem:[%s3] sm:$0x1]
  %v19 = vld [vmem:[%s3 + $0x1] sm:$0x1]
  %v20 = vld [vmem:[%s3 + $0x2] sm:$0x1]
  %v21 = vld [vmem:[%s3 + $0x3] sm:$0x1]
  %v22 = vld [vmem:[%s3 + $0x4] sm:$0x1]
  %v23 = vld [vmem:[%s3 + $0x5] sm:$0x1]
  %v24 = vld [vmem:[%s3 + $0x6] sm:$0x1]
  %v25 = vld [vmem:[%s3 + $0x7] sm:$0x1]
  %v26 = vld [vmem:[%s3 + $0x8] sm:$0xff]
  %v27 = vld [vmem:[%s3 + $0x10] sm:$0xff]
  %v28 = vld [vmem:[%s3 + $0x18] sm:$0xff]
  %v29 = vld [vmem:[%s3 + $0x20] sm:$0xff]
  %v30 = vpack.c.bf16 %v27, %v26
  %v31 = vpack.c.bf16 %v29, %v28
  %v32 = vld [vmem:[%s3 + $0x28] sm:$0xff]
  %v33 = vld [vmem:[%s3 + $0x30] sm:$0xff]
  %v34 = vld [vmem:[%s3 + $0x38] sm:$0xff]
  %v35 = vld [vmem:[%s3 + $0x40] sm:$0xff]
  %v36 = vpack.c.bf16 %v33, %v32
  %v37 = vpack.c.bf16 %v35, %v34
  %v38 = vld [vmem:[%s3 + $0x48] sm:$0xff]
  %v39 = vld [vmem:[%s3 + $0x50] sm:$0xff]
  %v40 = vld [vmem:[%s3 + $0x58] sm:$0xff]
  %v41 = vld [vmem:[%s3 + $0x60] sm:$0xff]
  %v42 = vpack.c.bf16 %v39, %v38
  %v43 = vpack.c.bf16 %v41, %v40
  %v44 = vld [vmem:[%s3 + $0x68] sm:$0xff]
  %v45 = vld [vmem:[%s3 + $0x70] sm:$0xff]
  %v46 = vld [vmem:[%s3 + $0x78] sm:$0xff]
  %v47 = vld [vmem:[%s3 + $0x80] sm:$0xff]
  %v48 = vld [vmem:[%s3 + $0x88] sm:$0xff]
  %v49 = vld [vmem:[%s3 + $0x90] sm:$0xff]
  %v50 = vld [vmem:[%s3 + $0x98] sm:$0xff]
  %v51 = vld [vmem:[%s3 + $0xa0] sm:$0xff]
  %v52 = vld [vmem:[%s0] sm:$0xf]
  %v53 = vld [vmem:[%s0 + $0x4] sm:$0xf]
  %v54 = vperm.slane %v18, 0
  %v57 = vunpack.c.l.b16 %v52
  %v58 = vunpack.c.l.b16 %v53
  %v59 = vpack.c.b16 %v58, %v57
  %vm60 = vcmask 261120
  %v62 = vsel %vm60, %v59, 0
  %64 = vmatpush.bf16.msra.mxu0 0
  %65 = vmatpush.bf16.msra.mxu0 0
  %66 = vmatpush.bf16.msra.mxu0 0
  %67 = vmatpush.bf16.msra.mxu0 0
  %68 = vmatpush.bf16.msra.mxu0 0
  %69 = vmatpush.bf16.msra.mxu0 0
  %70 = vmatpush.bf16.msra.mxu0 %v31
  %71 = vmatpush.bf16.msra.mxu0 %v30
  %72 = vmatmul.bf16.gmra.mxu0 %v62
  %v73 = vpop.f32.mrf.mxu0
  %v74 = vadd.f32 %v54, %v73
  %v75 = vpop.f32.mrf.mxu0
  %v76 = vadd.f32 %v54, %v75
  %77 = vdwg.mxu0
  %v78 = vtanh.pop %v74
  %v79 = vtanh.pop %v76
  %v80 = vperm.slane %v19, 0
  %v81 = vmul.f32 %v78, %v80
  %v82 = vmul.f32 %v79, %v80
  %v83 = vsel %vm60, %v81, 0.0
  %84 = vadd.xlane.f32.xlu0 %v83
  %v85 = vpop.xlane.xlu0 %84
  %v86 = vsel %vm60, %v82, 0.0
  %87 = vadd.xlane.f32.xlu0 %v86
  %v88 = vpop.xlane.xlu0 %87
  %v89 = vrot.slane %v85, 4
  %v90 = vmax.f32 %v85, %v89
  %v91 = vrot.slane %v90, 2
  %v92 = vmax.f32 %v90, %v91
  %v93 = vrot.slane %v92, 1
  %v94 = vmax.f32 %v92, %v93
  %v95 = vrot.slane %v88, 4
  %v96 = vmax.f32 %v88, %v95
  %v97 = vrot.slane %v96, 2
  %v98 = vmax.f32 %v96, %v97
  %v99 = vrot.slane %v98, 1
  %v100 = vmax.f32 %v98, %v99
  %v101 = vsub.f32 %v85, %v94
  %v102 = vsub.f32 %v88, %v100
  %v103 = vmul.f32 %v101, 1.442695
  %v104 = vpow.pop %v103
  %v105 = vmul.f32 %v102, 1.442695
  %v106 = vpow.pop %v105
  %v107 = vrot.slane %v104, 4
  %v108 = vadd.f32 %v104, %v107
  %v109 = vrot.slane %v108, 2
  %v110 = vadd.f32 %v108, %v109
  %v111 = vrot.slane %v110, 1
  %v112 = vadd.f32 %v110, %v111
  %v113 = vrot.slane %v106, 4
  %v114 = vadd.f32 %v106, %v113
  %v115 = vrot.slane %v114, 2
  %v116 = vadd.f32 %v114, %v115
  %v117 = vrot.slane %v116, 1
  %v118 = vadd.f32 %v116, %v117
  %v119 = vrcp.pop %v112
  %v120 = vrcp.pop %v118
  %v121 = vmul.f32 %v104, %v119
  %v122 = vmul.f32 %v106, %v120
  %v123 = vunpack.c.l.bf16 %v52
  %v124 = vunpack.c.l.bf16 %v53
  %v125 = vmul.f32 %v121, %v123
  %v126 = vmul.f32 %v122, %v124
  %v127 = vsel %vm60, %v125, 0.0
  %v128 = vrot.slane %v127, 4
  %v129 = vadd.f32 %v127, %v128
  %v130 = vrot.slane %v129, 2
  %v131 = vadd.f32 %v129, %v130
  %v132 = vrot.slane %v131, 1
  %v133 = vadd.f32 %v131, %v132
  %v134 = vsel %vm60, %v126, 0.0
  %v135 = vrot.slane %v134, 4
  %v136 = vadd.f32 %v134, %v135
  %v137 = vrot.slane %v136, 2
  %v138 = vadd.f32 %v136, %v137
  %v139 = vrot.slane %v138, 1
  %v140 = vadd.f32 %v138, %v139
  %v141 = vperm.slane %v24, 0
  %vm144 = vcmask 1041409
  %v145 = vsel %vm144, %v140, %v133
  %v146 = vsel %vm60, %v145, 0
  %148 = vmatpush.msra.mxu0 0.0
  %149 = vmatpush.msra.mxu0 0.0
  %150 = vmatpush.msra.mxu0 0.0
  %151 = vmatpush.msra.mxu0 0.0
  %152 = vmatpush.msra.mxu0 0.0
  %153 = vmatpush.msra.mxu0 0.0
  %154 = vmatpush.msra.mxu0 0.0
  %155 = vmatpush.msra.mxu0 0.0
  %156 = vmatpush.msra.mxu0 0.0
  %157 = vmatpush.msra.mxu0 0.0
  %158 = vmatpush.msra.mxu0 0.0
  %159 = vmatpush.msra.mxu0 0.0
  %160 = vmatpush.msra.mxu0 %v47
  %161 = vmatpush.msra.mxu0 %v46
  %162 = vmatpush.msra.mxu0 %v45
  %163 = vmatpush.msra.mxu0 %v44
  %164 = vmatmul.f32.gmra.mxu0 %v146
  %v165 = vpop.f32.mrf.mxu0
  %v166 = vadd.f32 %v141, %v165
  %167 = vdwg.mxu0
  %v168 = vperm.slane %v25, 0
  %169 = vmatpush.msra.mxu0 0.0
  %170 = vmatpush.msra.mxu0 0.0
  %171 = vmatpush.msra.mxu0 0.0
  %172 = vmatpush.msra.mxu0 0.0
  %173 = vmatpush.msra.mxu0 0.0
  %174 = vmatpush.msra.mxu0 0.0
  %175 = vmatpush.msra.mxu0 0.0
  %176 = vmatpush.msra.mxu0 0.0
  %177 = vmatpush.msra.mxu0 0.0
  %178 = vmatpush.msra.mxu0 0.0
  %179 = vmatpush.msra.mxu0 0.0
  %180 = vmatpush.msra.mxu0 0.0
  %181 = vmatpush.msra.mxu0 %v51
  %182 = vmatpush.msra.mxu0 %v50
  %183 = vmatpush.msra.mxu0 %v49
  %184 = vmatpush.msra.mxu0 %v48
  %185 = vmatmul.f32.gmra.mxu0 %v146
  %v186 = vpop.f32.mrf.mxu0
  %v187 = vadd.f32 %v168, %v186
  %188 = vdwg.mxu0
  %v189 = vld [vmem:[%s1] sm:$0xf]
  %v190 = vld [vmem:[%s1 + $0x4] sm:$0xf]
  %v191 = vld [vmem:[%s1 + $0x8] sm:$0xf]
  %v192 = vld [vmem:[%s1 + $0xc] sm:$0xf]
  %v193 = vperm.slane %v20, 0
  %v198 = vunpack.c.l.b16 %v189
  %v199 = vunpack.c.l.b16 %v190
  %v200 = vunpack.c.l.b16 %v191
  %v201 = vunpack.c.l.b16 %v192
  %v202 = vpack.c.b16 %v199, %v198
  %v203 = vpack.c.b16 %v201, %v200
  %v205 = vsel %vm60, %v202, 0
  %v208 = vsel %vm60, %v203, 0
  %210 = vmatpush.bf16.msra.mxu0 0
  %211 = vmatpush.bf16.msra.mxu0 0
  %212 = vmatpush.bf16.msra.mxu0 0
  %213 = vmatpush.bf16.msra.mxu0 0
  %214 = vmatpush.bf16.msra.mxu0 0
  %215 = vmatpush.bf16.msra.mxu0 0
  %216 = vmatpush.bf16.msra.mxu0 %v37
  %217 = vmatpush.bf16.msra.mxu0 %v36
  %218 = vmatmul.bf16.gmra.mxu0 %v205
  %v219 = vpop.f32.mrf.mxu0
  %v220 = vadd.f32 %v193, %v219
  %v221 = vpop.f32.mrf.mxu0
  %v222 = vadd.f32 %v193, %v221
  %223 = vmatmul.bf16.gmra.mxu0 %v208
  %v224 = vpop.f32.mrf.mxu0
  %v225 = vadd.f32 %v193, %v224
  %v226 = vpop.f32.mrf.mxu0
  %v227 = vadd.f32 %v193, %v226
  %228 = vdwg.mxu0
  %v230 = vrot.slane %v166, 1
  %v231 = vperm.slane %v166, 0
  %v232 = vperm.slane %v230, 0
  %v235 = vadd.f32 %v220, %v231
  %v236 = vadd.f32 %v222, %v231
  %v237 = vadd.f32 %v225, %v232
  %v238 = vadd.f32 %v227, %v232
  %v239 = vtanh.pop %v235
  %v240 = vtanh.pop %v236
  %v241 = vtanh.pop %v237
  %v242 = vtanh.pop %v238
  %v243 = vperm.slane %v22, 0
  %v244 = vmul.f32 %v239, %v243
  %v245 = vmul.f32 %v240, %v243
  %v246 = vmul.f32 %v241, %v243
  %v247 = vmul.f32 %v242, %v243
  %v248 = vsel %vm60, %v244, 0.0
  %249 = vadd.xlane.f32.xlu0 %v248
  %v250 = vpop.xlane.xlu0 %249
  %v251 = vsel %vm60, %v245, 0.0
  %252 = vadd.xlane.f32.xlu0 %v251
  %v253 = vpop.xlane.xlu0 %252
  %v254 = vsel %vm60, %v246, 0.0
  %255 = vadd.xlane.f32.xlu0 %v254
  %v256 = vpop.xlane.xlu0 %255
  %v257 = vsel %vm60, %v247, 0.0
  %258 = vadd.xlane.f32.xlu0 %v257
  %v259 = vpop.xlane.xlu0 %258
  %v264 = vlaneseq
  %v265 = vand.u32 %v264, 127
  %v266 = vperm.slane %v250, %v265
  %v267 = vadd.s32 %v265, 4294967288
  %v268 = vperm.slane %v253, %v267
  %vm269 = vcmask 130112
  %v270 = vsel %vm269, %v268, %v266
  %v271 = vperm.slane %v256, %v265
  %v272 = vperm.slane %v259, %v267
  %v273 = vsel %vm269, %v272, %v271
  %v274 = vsel %vm144, %v273, %v270
  %vm276 = vcmask 123904
  %v277 = vsel %vm276, %v274, -inf
  %278 = vmax.xlane.f32.xlu0 %v277
  %v279 = vpop.xlane.xlu0 %278
  %v281 = vperm.slane %v279, 0
  %v282 = vperm.slane %v279, 1
  %v285 = vsub.f32 %v250, %v281
  %v286 = vsub.f32 %v253, %v281
  %v287 = vsub.f32 %v256, %v282
  %v288 = vsub.f32 %v259, %v282
  %v289 = vmul.f32 %v285, 1.442695
  %v290 = vpow.pop %v289
  %v291 = vmul.f32 %v286, 1.442695
  %v292 = vpow.pop %v291
  %v293 = vmul.f32 %v287, 1.442695
  %v294 = vpow.pop %v293
  %v295 = vmul.f32 %v288, 1.442695
  %v296 = vpow.pop %v295
  %301 = vset.pattern.permute.xlu0 0
  %302 = vperm.xlu0 %301, %v290
  %v303 = vpop.permute.xlu0 %302
  %304 = vset.pattern.permute.xlu0 0
  %305 = vperm.xlu0 %304, %v292
  %v306 = vpop.permute.xlu0 %305
  %307 = vset.pattern.permute.xlu0 0
  %308 = vperm.xlu0 %307, %v294
  %v309 = vpop.permute.xlu0 %308
  %310 = vset.pattern.permute.xlu0 0
  %311 = vperm.xlu0 %310, %v296
  %v312 = vpop.permute.xlu0 %311
  %v313 = vperm.slane %v303, %v265
  %v314 = vperm.slane %v306, %v267
  %v315 = vsel %vm269, %v314, %v313
  %v316 = vperm.slane %v309, %v265
  %v317 = vperm.slane %v312, %v267
  %v318 = vsel %vm269, %v317, %v316
  %v319 = vsel %vm144, %v318, %v315
  %v321 = vsel %vm276, %v319, 0.0
  %322 = vadd.xlane.f32.xlu0 %v321
  %v323 = vpop.xlane.xlu0 %322
  %v324 = vrcp.pop %v323
  %v326 = vperm.slane %v324, 0
  %v327 = vperm.slane %v324, 1
  %v330 = vmul.f32 %v290, %v326
  %v331 = vmul.f32 %v292, %v326
  %v332 = vmul.f32 %v294, %v327
  %v333 = vmul.f32 %v296, %v327
  %v334 = vld [vmem:[%s2] sm:$0xf]
  %v335 = vld [vmem:[%s2 + $0x4] sm:$0xf]
  %v336 = vld [vmem:[%s2 + $0x8] sm:$0xf]
  %v337 = vld [vmem:[%s2 + $0xc] sm:$0xf]
  %v338 = vperm.slane %v21, 0
  %v343 = vunpack.c.l.b16 %v334
  %v344 = vunpack.c.l.b16 %v335
  %v345 = vunpack.c.l.b16 %v336
  %v346 = vunpack.c.l.b16 %v337
  %v347 = vpack.c.b16 %v344, %v343
  %v348 = vpack.c.b16 %v346, %v345
  %v350 = vsel %vm60, %v347, 0
  %v353 = vsel %vm60, %v348, 0
  %355 = vmatpush.bf16.msra.mxu0 0
  %356 = vmatpush.bf16.msra.mxu0 0
  %357 = vmatpush.bf16.msra.mxu0 0
  %358 = vmatpush.bf16.msra.mxu0 0
  %359 = vmatpush.bf16.msra.mxu0 0
  %360 = vmatpush.bf16.msra.mxu0 0
  %361 = vmatpush.bf16.msra.mxu0 %v43
  %362 = vmatpush.bf16.msra.mxu0 %v42
  %363 = vmatmul.bf16.gmra.mxu0 %v350
  %v364 = vpop.f32.mrf.mxu0
  %v365 = vadd.f32 %v338, %v364
  %v366 = vpop.f32.mrf.mxu0
  %v367 = vadd.f32 %v338, %v366
  %368 = vmatmul.bf16.gmra.mxu0 %v353
  %v369 = vpop.f32.mrf.mxu0
  %v370 = vadd.f32 %v338, %v369
  %v371 = vpop.f32.mrf.mxu0
  %v372 = vadd.f32 %v338, %v371
  %373 = vdwg.mxu0
  %v375 = vrot.slane %v187, 1
  %v376 = vperm.slane %v187, 0
  %v377 = vperm.slane %v375, 0
  %v380 = vadd.f32 %v365, %v376
  %v381 = vadd.f32 %v367, %v376
  %v382 = vadd.f32 %v370, %v377
  %v383 = vadd.f32 %v372, %v377
  %v384 = vtanh.pop %v380
  %v385 = vtanh.pop %v381
  %v386 = vtanh.pop %v382
  %v387 = vtanh.pop %v383
  %v388 = vperm.slane %v23, 0
  %v389 = vmul.f32 %v384, %v388
  %v390 = vmul.f32 %v385, %v388
  %v391 = vmul.f32 %v386, %v388
  %v392 = vmul.f32 %v387, %v388
  %v393 = vsel %vm60, %v389, 0.0
  %394 = vadd.xlane.f32.xlu0 %v393
  %v395 = vpop.xlane.xlu0 %394
  %v396 = vsel %vm60, %v390, 0.0
  %397 = vadd.xlane.f32.xlu0 %v396
  %v398 = vpop.xlane.xlu0 %397
  %v399 = vsel %vm60, %v391, 0.0
  %400 = vadd.xlane.f32.xlu0 %v399
  %v401 = vpop.xlane.xlu0 %400
  %v402 = vsel %vm60, %v392, 0.0
  %403 = vadd.xlane.f32.xlu0 %v402
  %v404 = vpop.xlane.xlu0 %403
  %v409 = vperm.slane %v395, %v265
  %v410 = vperm.slane %v398, %v267
  %v411 = vsel %vm269, %v410, %v409
  %v412 = vperm.slane %v401, %v265
  %v413 = vperm.slane %v404, %v267
  %v414 = vsel %vm269, %v413, %v412
  %v415 = vsel %vm144, %v414, %v411
  %v417 = vsel %vm276, %v415, -inf
  %418 = vmax.xlane.f32.xlu0 %v417
  %v419 = vpop.xlane.xlu0 %418
  %v421 = vperm.slane %v419, 0
  %v422 = vperm.slane %v419, 1
  %v425 = vsub.f32 %v395, %v421
  %v426 = vsub.f32 %v398, %v421
  %v427 = vsub.f32 %v401, %v422
  %v428 = vsub.f32 %v404, %v422
  %v429 = vmul.f32 %v425, 1.442695
  %v430 = vpow.pop %v429
  %v431 = vmul.f32 %v426, 1.442695
  %v432 = vpow.pop %v431
  %v433 = vmul.f32 %v427, 1.442695
  %v434 = vpow.pop %v433
  %v435 = vmul.f32 %v428, 1.442695
  %v436 = vpow.pop %v435
  %441 = vset.pattern.permute.xlu0 0
  %442 = vperm.xlu0 %441, %v430
  %v443 = vpop.permute.xlu0 %442
  %444 = vset.pattern.permute.xlu0 0
  %445 = vperm.xlu0 %444, %v432
  %v446 = vpop.permute.xlu0 %445
  %447 = vset.pattern.permute.xlu0 0
  %448 = vperm.xlu0 %447, %v434
  %v449 = vpop.permute.xlu0 %448
  %450 = vset.pattern.permute.xlu0 0
  %451 = vperm.xlu0 %450, %v436
  %v452 = vpop.permute.xlu0 %451
  %v453 = vperm.slane %v443, %v265
  %v454 = vperm.slane %v446, %v267
  %v455 = vsel %vm269, %v454, %v453
  %v456 = vperm.slane %v449, %v265
  %v457 = vperm.slane %v452, %v267
  %v458 = vsel %vm269, %v457, %v456
  %v459 = vsel %vm144, %v458, %v455
  %v461 = vsel %vm276, %v459, 0.0
  %462 = vadd.xlane.f32.xlu0 %v461
  %v463 = vpop.xlane.xlu0 %462
  %v464 = vrcp.pop %v463
  %v466 = vperm.slane %v464, 0
  %v467 = vperm.slane %v464, 1
  %v470 = vmul.f32 %v430, %v466
  %v471 = vmul.f32 %v432, %v466
  %v472 = vmul.f32 %v434, %v467
  %v473 = vmul.f32 %v436, %v467
  %478 = vset.pattern.permute.xlu0 0
  %479 = vperm.xlu0 %478, %v330
  %v480 = vpop.permute.xlu0 %479
  %481 = vset.pattern.permute.xlu0 0
  %482 = vperm.xlu0 %481, %v331
  %v483 = vpop.permute.xlu0 %482
  %484 = vset.pattern.permute.xlu0 0
  %485 = vperm.xlu0 %484, %v332
  %v486 = vpop.permute.xlu0 %485
  %487 = vset.pattern.permute.xlu0 0
  %488 = vperm.xlu0 %487, %v333
  %v489 = vpop.permute.xlu0 %488
  %v490 = vperm.slane %v480, %v265
  %v491 = vperm.slane %v483, %v267
  %v492 = vsel %vm269, %v491, %v490
  %v493 = vperm.slane %v486, %v265
  %v494 = vperm.slane %v489, %v267
  %v495 = vsel %vm269, %v494, %v493
  %v496 = vsel %vm144, %v495, %v492
  %502 = vset.pattern.permute.xlu0 0
  %503 = vperm.xlu0 %502, %v470
  %v504 = vpop.permute.xlu0 %503
  %505 = vset.pattern.permute.xlu0 0
  %506 = vperm.xlu0 %505, %v471
  %v507 = vpop.permute.xlu0 %506
  %508 = vset.pattern.permute.xlu0 0
  %509 = vperm.xlu0 %508, %v472
  %v510 = vpop.permute.xlu0 %509
  %511 = vset.pattern.permute.xlu0 0
  %512 = vperm.xlu0 %511, %v473
  %v513 = vpop.permute.xlu0 %512
  %v514 = vadd.s32 %v265, 4294967280
  %v515 = vperm.slane %v504, %v514
  %v516 = vadd.s32 %v265, 4294967272
  %v517 = vperm.slane %v507, %v516
  %vm518 = vcmask 261312
  %v519 = vsel %vm518, %v517, %v515
  %v520 = vperm.slane %v510, %v514
  %v521 = vperm.slane %v513, %v516
  %v522 = vsel %vm518, %v521, %v520
  %v523 = vsel %vm144, %v522, %v519
  %vm525 = vcmask 130048
  %v526 = vsel %vm525, %v496, %v523
  %v527 = vsel %vm60, %v526, 0.0
  %528 = vst [vmem:[%s4] sm:$0x3] %v527
  // Predicated region
  $region18: #{cross_atten.1} parent=0 // pred_check
    _
  $region19: #{cross_atten.1} parent=0 // pred_check_branch
    %530 = sbr.rel (0) target = $region21
  $region20: #{cross_atten.1} parent=0 // pred_region
    _
  $region21: #{cross_atten.1} parent=0 // pred_fallthru
    _
  // Predicated region
  $region22: #{cross_atten.1} parent=0 // pred_check
    _
  $region23: #{cross_atten.1} parent=0 // pred_check_branch
    %532 = sbr.rel (0) target = $region25
  $region24: #{cross_atten.1} parent=0 // pred_region
    _
  $region25: #{cross_atten.1} parent=0 // pred_fallthru
    _

</llo_original>
